<compile_context>
chip_gen: v5e
topology: v5e:2x2
jax: 0.10.0
libtpu: 0.0.40
codegen_flags: <defaults>
</compile_context>

<pallas_src>
import jax
import jax.numpy as jnp
from jax.experimental import pallas as pl
from jax.experimental.pallas import tpu as pltpu


def _round_up(x: int, m: int) -> int:
    return (x + m - 1) // m * m


def _mlp_kernel(x_ref, w1_ref, b1_ref, w2_ref, b2_ref, o_ref):
    # fc1: cast f32 x tile -> bf16 in VMEM, then bf16 @ bf16 -> f32 on the MXU.
    x = x_ref[...].astype(jnp.bfloat16)
    h = jnp.dot(x, w1_ref[...], preferred_element_type=jnp.float32)
    # bias + ReLU in f32 (rides in spare VALU slots; v5e has no bf16 VPU path).
    h = jnp.maximum(h + b1_ref[...], 0.0)
    # dropout (eval mode) = identity
    # fc2: bf16 [TM, H] @ bf16 [H, C] -> f32 accumulate.
    y = jnp.dot(h.astype(jnp.bfloat16), w2_ref[...],
                preferred_element_type=jnp.float32)
    o_ref[...] = (y + b2_ref[...]).astype(o_ref.dtype)


def _choose_row_tile(n: int, tm_max: int) -> int:
    """Row tile: full N for small inputs; otherwise a multiple of 128 giving >=2
    grid steps so both v7x TensorCores get work (harmless on v5e/v6e)."""
    if n <= 256:
        return n                      # block equals full dim -> no (8,128) constraint
    return max(128, min(tm_max, _round_up(pl.cdiv(n, 2), 128)))


def node_classifier_forward(x, w1, b1, w2, b2, *, tm_max=1024):
    """x: [N, D] f32; w1: [D, H] (bf16 or f32); b1: [1, H]; w2: [H, C]; b2: [1, C] -> [N, C] f32."""
    n, d = x.shape
    h = w1.shape[1]
    c = w2.shape[1]

    # Matmul weights ride the MXU in bf16; no-op if already converted at init.
    w1 = w1.astype(jnp.bfloat16)
    w2 = w2.astype(jnp.bfloat16)
    b1 = b1.reshape(1, h).astype(jnp.float32)
    b2 = b2.reshape(1, c).astype(jnp.float32)

    tm = _choose_row_tile(n, tm_max)
    grid = (pl.cdiv(n, tm),)

    flops = 2 * n * (d * h + h * c)
    bytes_accessed = (x.size * 4 + w1.size * 2 + w2.size * 2
                      + b1.size * 4 + b2.size * 4 + n * c * 4)

    # VMEM budget: double-buffered x/out tiles + (conservatively double-buffered)
    # resident weights, with headroom; clamp to [32 MiB, 64 MiB] (v7x VMEM = 64 MiB).
    vmem_bytes = (2 * (tm * d * 4 + tm * c * 4)
                  + 2 * (w1.size * 2 + w2.size * 2 + b1.size * 4 + b2.size * 4))
    vmem_limit = int(min(max(int(vmem_bytes * 1.5) + (4 << 20), 32 << 20), 64 << 20))

    out = pl.pallas_call(
        _mlp_kernel,
        out_shape=jax.ShapeDtypeStruct((n, c), jnp.float32),
        grid=grid,
        in_specs=[
            pl.BlockSpec((tm, d), lambda i: (i, 0)),   # x: row-tiled, unpadded f32
            pl.BlockSpec((d, h), lambda i: (0, 0)),    # W1: resident
            pl.BlockSpec((1, h), lambda i: (0, 0)),    # b1: resident
            pl.BlockSpec((h, c), lambda i: (0, 0)),    # W2: resident
            pl.BlockSpec((1, c), lambda i: (0, 0)),    # b2: resident
        ],
        out_specs=pl.BlockSpec((tm, c), lambda i: (i, 0)),   # unpadded (N, C) output
        compiler_params=pltpu.CompilerParams(
            dimension_semantics=("parallel",),
            vmem_limit_bytes=vmem_limit),
        cost_estimate=pl.CostEstimate(
            flops=flops, transcendentals=0, bytes_accessed=bytes_accessed),
    )(x, w1, b1, w2, b2)

    return out


def init_params(key, input_size, hidden_size, num_classes):
    """Deterministic init mimicking torch.nn.Linear (uniform +/- 1/sqrt(fan_in)).
    Weights are stored [in, out] and pre-converted to bf16 once (hoisted out of
    the per-call forward); biases stay f32."""
    k1, k2, k3, k4 = jax.random.split(key, 4)
    bound1 = 1.0 / jnp.sqrt(input_size)
    bound2 = 1.0 / jnp.sqrt(hidden_size)
    w1 = jax.random.uniform(k1, (input_size, hidden_size), jnp.float32, -bound1, bound1)
    b1 = jax.random.uniform(k2, (1, hidden_size), jnp.float32, -bound1, bound1)
    w2 = jax.random.uniform(k3, (hidden_size, num_classes), jnp.float32, -bound2, bound2)
    b2 = jax.random.uniform(k4, (1, num_classes), jnp.float32, -bound2, bound2)
    return w1.astype(jnp.bfloat16), b1, w2.astype(jnp.bfloat16), b2


if __name__ == "__main__":
    # Small shapes consistent with the module: batch of nodes, embedding dim,
    # hidden_size=128 (as in the reference script), a handful of classes.
    batch = 8
    input_size = 64
    hidden_size = 128
    num_classes = 8

    key = jax.random.PRNGKey(0)
    kx, kp = jax.random.split(key)
    x = jax.random.normal(kx, (batch, input_size), jnp.float32)
    w1, b1, w2, b2 = init_params(kp, input_size, hidden_size, num_classes)

    out = node_classifier_forward(x, w1, b1, w2, b2)
    jax.block_until_ready(out)
    assert out.shape == (batch, num_classes)

    # Reference of the same forward pass with matching bf16-in / f32-accumulate
    # matmul precision.
    xb = x.astype(jnp.bfloat16)
    h_ref = jnp.maximum(
        jnp.dot(xb, w1, preferred_element_type=jnp.float32) + b1, 0.0)
    ref = jnp.dot(h_ref.astype(jnp.bfloat16), w2,
                  preferred_element_type=jnp.float32) + b2
    assert jnp.allclose(out, ref, atol=1e-2, rtol=1e-2), (
        jnp.max(jnp.abs(out - ref)))

    print("KERNEL_OK")
</pallas_src>

<mosaic_0001>
module attributes {stable_mosaic.version = 11 : i64} {
  func.func @_mlp_kernel(%arg0: i32, %arg1: memref<8x64xf32, #tpu.memory_space<vmem>>, %arg2: memref<64x128xbf16, #tpu.memory_space<vmem>>, %arg3: memref<1x128xf32, #tpu.memory_space<vmem>>, %arg4: memref<128x8xbf16, #tpu.memory_space<vmem>>, %arg5: memref<1x8xf32, #tpu.memory_space<vmem>>, %arg6: memref<8x8xf32, #tpu.memory_space<vmem>>) attributes {dimension_semantics = [#tpu.dimension_semantics<parallel>], iteration_bounds = array<i64: 1>, scalar_prefetch = 0 : i64, scratch_operands = 0 : i64, tpu.core_type = #tpu.core_type<tc>, window_params = [{transform_indices = @transform_0, window_bounds = array<i64: 8, 64>}, {pipeline_mode = #tpu.pipeline_mode<synchronous>, transform_indices = @transform_1, window_bounds = array<i64: 64, 128>}, {pipeline_mode = #tpu.pipeline_mode<synchronous>, transform_indices = @transform_2, window_bounds = array<i64: 1, 128>}, {pipeline_mode = #tpu.pipeline_mode<synchronous>, transform_indices = @transform_3, window_bounds = array<i64: 128, 8>}, {pipeline_mode = #tpu.pipeline_mode<synchronous>, transform_indices = @transform_4, window_bounds = array<i64: 1, 8>}, {transform_indices = @transform_5, window_bounds = array<i64: 8, 8>}]} {
    %c0 = arith.constant 0 : index
    %c0_0 = arith.constant 0 : index
    %0 = vector.load %arg1[%c0, %c0_0] : memref<8x64xf32, #tpu.memory_space<vmem>>, vector<8x64xf32>
    %1 = arith.truncf %0 : vector<8x64xf32> to vector<8x64xbf16>
    %c0_1 = arith.constant 0 : index
    %c0_2 = arith.constant 0 : index
    %2 = vector.load %arg2[%c0_1, %c0_2] : memref<64x128xbf16, #tpu.memory_space<vmem>>, vector<64x128xbf16>
    %cst = arith.constant dense<0.000000e+00> : vector<8x128xf32>
    %3 = tpu.matmul %1, %2, %cst {dimension_numbers = #tpu.dot_dimension_numbers<[1], [0], [0], [1], [0, 0, 1, 1], [], []>} : vector<8x64xbf16>, vector<64x128xbf16>, vector<8x128xf32> -> vector<8x128xf32>
    %c0_3 = arith.constant 0 : index
    %c0_4 = arith.constant 0 : index
    %4 = vector.load %arg3[%c0_3, %c0_4] : memref<1x128xf32, #tpu.memory_space<vmem>>, vector<1x128xf32>
    %5 = vector.broadcast %4 : vector<1x128xf32> to vector<8x128xf32>
    %6 = arith.addf %3, %5 : vector<8x128xf32>
    %cst_5 = arith.constant 0.000000e+00 : f32
    %7 = vector.broadcast %cst_5 : f32 to vector<8x128xf32>
    %8 = arith.maximumf %6, %7 : vector<8x128xf32>
    %9 = arith.truncf %8 : vector<8x128xf32> to vector<8x128xbf16>
    %c0_6 = arith.constant 0 : index
    %c0_7 = arith.constant 0 : index
    %10 = vector.load %arg4[%c0_6, %c0_7] : memref<128x8xbf16, #tpu.memory_space<vmem>>, vector<128x8xbf16>
    %cst_8 = arith.constant dense<0.000000e+00> : vector<8x8xf32>
    %11 = tpu.matmul %9, %10, %cst_8 {dimension_numbers = #tpu.dot_dimension_numbers<[1], [0], [0], [1], [0, 0, 1, 1], [], []>} : vector<8x128xbf16>, vector<128x8xbf16>, vector<8x8xf32> -> vector<8x8xf32>
    %c0_9 = arith.constant 0 : index
    %c0_10 = arith.constant 0 : index
    %12 = vector.load %arg5[%c0_9, %c0_10] : memref<1x8xf32, #tpu.memory_space<vmem>>, vector<1x8xf32>
    %13 = vector.broadcast %12 : vector<1x8xf32> to vector<8x8xf32>
    %14 = arith.addf %11, %13 : vector<8x8xf32>
    %c0_11 = arith.constant 0 : index
    %c0_12 = arith.constant 0 : index
    %15 = vector.load %arg6[%c0_11, %c0_12] : memref<8x8xf32, #tpu.memory_space<vmem>>, vector<8x8xf32>
    tpu.vector_store %arg6[%c0_11, %c0_12], %14 {strides = array<i32>} : memref<8x8xf32, #tpu.memory_space<vmem>>, vector<8x8xf32>,
    return
  }
  func.func @transform_0(%arg0: i32) -> (i32, i32) {
    %c0_i32 = arith.constant 0 : i32
    %c0_i32_0 = arith.constant 0 : i32
    return %arg0, %c0_i32 : i32, i32
  }
  func.func @transform_1(%arg0: i32) -> (i32, i32) {
    %c0_i32 = arith.constant 0 : i32
    %c0_i32_0 = arith.constant 0 : i32
    %c0_i32_1 = arith.constant 0 : i32
    return %c0_i32, %c0_i32_0 : i32, i32
  }
  func.func @transform_2(%arg0: i32) -> (i32, i32) {
    %c0_i32 = arith.constant 0 : i32
    %c0_i32_0 = arith.constant 0 : i32
    %c0_i32_1 = arith.constant 0 : i32
    return %c0_i32, %c0_i32_0 : i32, i32
  }
  func.func @transform_3(%arg0: i32) -> (i32, i32) {
    %c0_i32 = arith.constant 0 : i32
    %c0_i32_0 = arith.constant 0 : i32
    %c0_i32_1 = arith.constant 0 : i32
    return %c0_i32, %c0_i32_0 : i32, i32
  }
  func.func @transform_4(%arg0: i32) -> (i32, i32) {
    %c0_i32 = arith.constant 0 : i32
    %c0_i32_0 = arith.constant 0 : i32
    %c0_i32_1 = arith.constant 0 : i32
    return %c0_i32, %c0_i32_0 : i32, i32
  }
  func.func @transform_5(%arg0: i32) -> (i32, i32) {
    %c0_i32 = arith.constant 0 : i32
    %c0_i32_0 = arith.constant 0 : i32
    return %arg0, %c0_i32 : i32, i32
  }
}

</mosaic_0001>

<llo_original>
// kernel: tpu_custom_call.1
$region0: #{tpu_custom_call.1}
  #allocation0 [shape = 'u32[]', space=smem, size = 0x4, offset = 0x4, fixed_abs, tag = 'smem constant byte address 0x4 - core index']
  #allocation1 [shape = 'u32[72,128]{1,0:T(1,128)}', space=vmem, size = 0x9000, scoped, tag = 'internal scratch']
  %s0 = inlined_call_operand.vmem [shape: f32[8,64], index: 0, kind: input, shape index: {}]
  %s1 = inlined_call_operand.vmem [shape: bf16[64,128], index: 1, kind: input, shape index: {}]
  %s2 = inlined_call_operand.vmem [shape: f32[1,128], index: 2, kind: input, shape index: {}]
  %s3 = inlined_call_operand.vmem [shape: bf16[128,8], index: 3, kind: input, shape index: {}]
  %s4 = inlined_call_operand.vmem [shape: f32[1,8], index: 4, kind: input, shape index: {}]
  %s5 = inlined_call_operand.hbm [shape: f32[8,8], index: 5, kind: output, shape index: {}]
  %s6 = sld [smem:[#allocation0]]
  $region30: #{tpu_custom_call.1} parent=0
    _
  %s8 = ssub.s32 1, %s6
  %s9 = scalar_select 0, %s8, %s6
  $region1: #{tpu_custom_call.1} parent=0
    #allocation2 [shape = 'u8[4096]{0}', space=vmem, size = 0x1000, scoped, tag = 'output window, operand 0, single buffered']
    #allocation3 [shape = 's32[1]{0}', space=sflag, size = 0x4, scoped, tag = 'scoped memory for tpu_custom_call.1']
    %10 = vsyncpa [#allocation3], 0
    // Predicated region
    $region2: #{tpu_custom_call.1} parent=1 // pred_check
      _
    $region3: #{tpu_custom_call.1} parent=1 // pred_check_branch
      %12 = sbr.rel (0) target = $region5
    $region4: #{tpu_custom_call.1} parent=1 // pred_region
      _
    $region5: #{tpu_custom_call.1} parent=1 // pred_fallthru
      _
    // Predicated region
    $region6: #{tpu_custom_call.1} parent=1 // pred_check
      _
    $region7: #{tpu_custom_call.1} parent=1 // pred_check_branch
      %14 = sbr.rel (0) target = $region9
    $region8: #{tpu_custom_call.1} parent=1 // pred_region
      _
    $region9: #{tpu_custom_call.1} parent=1 // pred_fallthru
      _
    // Predicated region
    $region10: #{tpu_custom_call.1} parent=1 // pred_check
      _
    $region11: #{tpu_custom_call.1} parent=1 // pred_check_branch
      %16 = sbr.rel (0) target = $region13
    $region12: #{tpu_custom_call.1} parent=1 // pred_region
      _
    $region13: #{tpu_custom_call.1} parent=1 // pred_fallthru
      _
    // Predicated region
    $region14: #{tpu_custom_call.1} parent=1 // pred_check
      _
    $region15: #{tpu_custom_call.1} parent=1 // pred_check_branch
      %18 = sbr.rel (0) target = $region17
    $region16: #{tpu_custom_call.1} parent=1 // pred_region
      _
    $region17: #{tpu_custom_call.1} parent=1 // pred_fallthru
      _
    // Predicated region
    $region18: #{tpu_custom_call.1} parent=1 // pred_check
      _
    $region19: #{tpu_custom_call.1} parent=1 // pred_check_branch
      %20 = sbr.rel (0) target = $region21
    $region20: #{tpu_custom_call.1} parent=1 // pred_region
      _
    $region21: #{tpu_custom_call.1} parent=1 // pred_fallthru
      _
    %v22 = vld [vmem:[%s0] sm:$0xff]
    %v23 = vpack.c.bf16 %v22, %v22
    %v24 = vld [vmem:[%s1] sm:$0xf]
    %v25 = vld [vmem:[%s1 + $0x4] sm:$0xf]
    %v26 = vld [vmem:[%s1 + $0x8] sm:$0xf]
    %v27 = vld [vmem:[%s1 + $0xc] sm:$0xf]
    %v28 = vld [vmem:[%s1 + $0x10] sm:$0xf]
    %v29 = vld [vmem:[%s1 + $0x14] sm:$0xf]
    %v30 = vld [vmem:[%s1 + $0x18] sm:$0xf]
    %v31 = vld [vmem:[%s1 + $0x1c] sm:$0xf]
    %v32 = vld [vmem:[%s2] sm:$0x1]
    %v34 = vperm.slane %v32, 0
    %v44 = vunpack.c.l.b16 %v24
    %v45 = vunpack.c.l.b16 %v25
    %v46 = vunpack.c.l.b16 %v26
    %v47 = vunpack.c.l.b16 %v27
    %v48 = vunpack.c.l.b16 %v28
    %v49 = vunpack.c.l.b16 %v29
    %v50 = vunpack.c.l.b16 %v30
    %v51 = vunpack.c.l.b16 %v31
    %v52 = vpack.c.b16 %v45, %v44
    %v53 = vpack.c.b16 %v47, %v46
    %v54 = vpack.c.b16 %v49, %v48
    %v55 = vpack.c.b16 %v51, %v50
    %vm60 = vcmask 523264
    %v62 = vsel %vm60, %v23, 0
    %64 = vmatpush.bf16.msra.mxu0 0
    %65 = vmatpush.bf16.msra.mxu0 0
    %66 = vmatpush.bf16.msra.mxu0 0
    %67 = vmatpush.bf16.msra.mxu0 0
    %68 = vmatpush.bf16.msra.mxu0 %v55
    %69 = vmatpush.bf16.msra.mxu0 %v54
    %70 = vmatpush.bf16.msra.mxu0 %v53
    %71 = vmatpush.bf16.msra.mxu0 %v52
    %72 = vmatmul.bf16.gmra.mxu0 %v62
    %v73 = vpop.f32.mrf.mxu0
    %v74 = vadd.f32 %v34, %v73
    %v75 = vpop.f32.mrf.mxu0
    %76 = vdwg.mxu0
    %v77 = vmax.f32 %v74, 0.0
    %v78 = vpack.c.bf16 %v77, %v77
    %v79 = vld [vmem:[%s3] sm:$0xf]
    %v80 = vld [vmem:[%s3 + $0x4] sm:$0xf]
    %v81 = vld [vmem:[%s3 + $0x8] sm:$0xf]
    %v82 = vld [vmem:[%s3 + $0xc] sm:$0xf]
    %v83 = vld [vmem:[%s3 + $0x10] sm:$0xf]
    %v84 = vld [vmem:[%s3 + $0x14] sm:$0xf]
    %v85 = vld [vmem:[%s3 + $0x18] sm:$0xf]
    %v86 = vld [vmem:[%s3 + $0x1c] sm:$0xf]
    %v87 = vld [vmem:[%s3 + $0x20] sm:$0xf]
    %v88 = vld [vmem:[%s3 + $0x24] sm:$0xf]
    %v89 = vld [vmem:[%s3 + $0x28] sm:$0xf]
    %v90 = vld [vmem:[%s3 + $0x2c] sm:$0xf]
    %v91 = vld [vmem:[%s3 + $0x30] sm:$0xf]
    %v92 = vld [vmem:[%s3 + $0x34] sm:$0xf]
    %v93 = vld [vmem:[%s3 + $0x38] sm:$0xf]
    %v94 = vld [vmem:[%s3 + $0x3c] sm:$0xf]
    %v95 = vld [vmem:[%s4] sm:$0x1]
    %v97 = vperm.slane %v95, 0
    %v115 = vunpack.c.l.b16 %v79
    %v116 = vunpack.c.l.b16 %v80
    %v117 = vunpack.c.l.b16 %v81
    %v118 = vunpack.c.l.b16 %v82
    %v119 = vunpack.c.l.b16 %v83
    %v120 = vunpack.c.l.b16 %v84
    %v121 = vunpack.c.l.b16 %v85
    %v122 = vunpack.c.l.b16 %v86
    %v123 = vunpack.c.l.b16 %v87
    %v124 = vunpack.c.l.b16 %v88
    %v125 = vunpack.c.l.b16 %v89
    %v126 = vunpack.c.l.b16 %v90
    %v127 = vunpack.c.l.b16 %v91
    %v128 = vunpack.c.l.b16 %v92
    %v129 = vunpack.c.l.b16 %v93
    %v130 = vunpack.c.l.b16 %v94
    %v131 = vpack.c.b16 %v116, %v115
    %v132 = vpack.c.b16 %v118, %v117
    %v133 = vpack.c.b16 %v120, %v119
    %v134 = vpack.c.b16 %v122, %v121
    %v135 = vpack.c.b16 %v124, %v123
    %v136 = vpack.c.b16 %v126, %v125
    %v137 = vpack.c.b16 %v128, %v127
    %v138 = vpack.c.b16 %v130, %v129
    %147 = vmatpush.bf16.msra.mxu0 %v138
    %148 = vmatpush.bf16.msra.mxu0 %v137
    %149 = vmatpush.bf16.msra.mxu0 %v136
    %150 = vmatpush.bf16.msra.mxu0 %v135
    %151 = vmatpush.bf16.msra.mxu0 %v134
    %152 = vmatpush.bf16.msra.mxu0 %v133
    %153 = vmatpush.bf16.msra.mxu0 %v132
    %154 = vmatpush.bf16.msra.mxu0 %v131
    %155 = vmatmul.bf16.gmra.mxu0 %v78
    %v156 = vpop.f32.mrf.mxu0
    %v157 = vadd.f32 %v97, %v156
    %v158 = vpop.f32.mrf.mxu0
    %159 = vdwg.mxu0
    %vm160 = vcmask 64512
    %161 = vst.msk [vmem:[#allocation2] sm:$0xff] %vm160, %v157
    // Predicated region
    $region22: #{tpu_custom_call.1} parent=1 // pred_check
      _
    $region23: #{tpu_custom_call.1} parent=1 // pred_check_branch
      %163 = sbr.rel (0) target = $region25
    $region24: #{tpu_custom_call.1} parent=1 // pred_region
      %165 = vsyncadd [#allocation3], 0
      %s167 = sshll.u32 [#allocation2], 4
      %s168 = int_to_ptr.vmem [resolvable:$true] %s167
      %s169 = sshll.u32 %s5, 4
      %s170 = int_to_ptr.hbm [resolvable:$true] %s169
      %172 = dma.vmem_to_hbm [thread:$0]  %s168, 128, %s170, [#allocation3]
    $region25: #{tpu_custom_call.1} parent=1 // pred_fallthru
      _
    // Predicated region
    $region26: #{tpu_custom_call.1} parent=1 // pred_check
      _
    $region27: #{tpu_custom_call.1} parent=1 // pred_check_branch
      %174 = sbr.rel (0) target = $region29
    $region28: #{tpu_custom_call.1} parent=1 // pred_region
      %176 = dma.done [#allocation3], 128
    $region29: #{tpu_custom_call.1} parent=1 // pred_fallthru
      _
    %177 = vsyncpa [#allocation3], 1

</llo_original>
